<compile_context>
chip_gen: v7x
topology: tpu7x:2x2x1
jax: 0.10.0
libtpu: 0.0.40
codegen_flags: <defaults>
</compile_context>

<pallas_src>
import functools

import jax
import jax.numpy as jnp
from jax.experimental import pallas as pl
from jax.experimental.pallas import tpu as pltpu

STATE_DIM = 4
HIDDEN = 128
ACTION_DIM = 2
OUT_PAD = 8  # padded fc3 output width (== full last dim of the output array)


def _round_up(n, m):
    return ((n + m - 1) // m) * m


def qnet_kernel(x_ref, w1_ref, b1_ref, w2_ref, b2_ref, w3_ref, b3_ref, o_ref):
    # Full fused forward pass for one batch tile; all operands VMEM-resident.
    # bf16 MXU operands, f32 accumulation; bias-add / ReLU in f32.
    x = x_ref[...].astype(jnp.bfloat16)                               # (TB, 4)
    h1 = jnp.dot(x, w1_ref[...], preferred_element_type=jnp.float32) + b1_ref[...]
    h1 = jnp.maximum(h1, 0.0)                                         # (TB, 128) f32
    h2 = jnp.dot(h1.astype(jnp.bfloat16), w2_ref[...],
                 preferred_element_type=jnp.float32) + b2_ref[...]
    h2 = jnp.maximum(h2, 0.0)                                         # (TB, 128) f32
    out = jnp.dot(h2.astype(jnp.bfloat16), w3_ref[...],
                  preferred_element_type=jnp.float32) + b3_ref[...]
    o_ref[...] = out.astype(o_ref.dtype)                              # (TB, 8) padded


def prepare_params(params):
    """One-time weight prep (do this OUTSIDE the training-step hot path):
    pad fc3 to OUT_PAD columns and cast weights to bf16 MXU operands."""
    w1, b1, w2, b2, w3, b3 = params
    w3p = jnp.pad(w3, ((0, 0), (0, OUT_PAD - ACTION_DIM)))
    b3p = jnp.pad(b3, ((0, 0), (0, OUT_PAD - ACTION_DIM)))
    return (w1.astype(jnp.bfloat16), b1,
            w2.astype(jnp.bfloat16), b2,
            w3p.astype(jnp.bfloat16), b3p)


@functools.partial(jax.jit, static_argnames=("block_b",))
def qnetwork_forward(x, prepared_params, block_b=1024):
    """x: (B, STATE_DIM) float32.  prepared_params from prepare_params().
    Returns (B, ACTION_DIM) float32."""
    w1b, b1, w2b, b2, w3b, b3p = prepared_params
    B = x.shape[0]

    if B == 0:  # static shape -> plain Python guard is fine under jit
        return jnp.zeros((0, ACTION_DIM), jnp.float32)

    # Tile selection: one tile of up to block_b rows (multiple of 8); larger batches
    # get multiple grid steps.  Per-tile working set (weights ~34 KiB bf16 + a few
    # f32 activation slabs) is ~2-3 MiB at tb=1024, well inside every generation's
    # scoped-VMEM default, so no vmem_limit_bytes override is needed.
    tb = min(block_b, _round_up(B, 8))
    Bp = _round_up(B, tb)
    xp = jnp.pad(x, ((0, Bp - B), (0, 0))) if Bp != B else x

    grid = (Bp // tb,)

    # Weights/biases are tiny; constant index_map keeps them VMEM-resident across
    # grid steps instead of re-DMA'ing per step.
    rep = lambda shape: pl.BlockSpec(shape, lambda i: (0,) * len(shape))

    flops = 2 * Bp * (STATE_DIM * HIDDEN + HIDDEN * HIDDEN + HIDDEN * OUT_PAD)
    bytes_accessed = (
        Bp * STATE_DIM * 4                      # x in (f32)
        + Bp * OUT_PAD * 4                      # out (f32)
        + (STATE_DIM * HIDDEN + HIDDEN * HIDDEN + HIDDEN * OUT_PAD) * 2  # bf16 weights
        + (HIDDEN + HIDDEN + OUT_PAD) * 4       # f32 biases
    )

    out = pl.pallas_call(
        qnet_kernel,
        out_shape=jax.ShapeDtypeStruct((Bp, OUT_PAD), jnp.float32),
        grid_spec=pltpu.PrefetchScalarGridSpec(
            num_scalar_prefetch=0,
            grid=grid,
            in_specs=[
                pl.BlockSpec((tb, STATE_DIM), lambda i: (i, 0)),  # x tile
                rep((STATE_DIM, HIDDEN)),                         # w1 (bf16)
                rep((1, HIDDEN)),                                 # b1 (f32)
                rep((HIDDEN, HIDDEN)),                            # w2 (bf16)
                rep((1, HIDDEN)),                                 # b2 (f32)
                rep((HIDDEN, OUT_PAD)),                           # w3 padded (bf16)
                rep((1, OUT_PAD)),                                # b3 padded (f32)
            ],
            out_specs=pl.BlockSpec((tb, OUT_PAD), lambda i: (i, 0)),
        ),
        compiler_params=pltpu.CompilerParams(
            dimension_semantics=("parallel",)
        ),
        cost_estimate=pl.CostEstimate(
            flops=flops, transcendentals=0, bytes_accessed=bytes_accessed),
    )(xp, w1b, b1, w2b, b2, w3b, b3p)

    return out[:B, :ACTION_DIM]


def init_params(key):
    """Deterministic init mirroring nn.Linear default (uniform +/- 1/sqrt(fan_in)).
    Weights stored as (in, out); biases stored as (1, out) for clean 2D VMEM layout."""
    def linear(key, fan_in, fan_out):
        kw, kb = jax.random.split(key)
        bound = 1.0 / jnp.sqrt(jnp.float32(fan_in))
        w = jax.random.uniform(kw, (fan_in, fan_out), jnp.float32, -bound, bound)
        b = jax.random.uniform(kb, (1, fan_out), jnp.float32, -bound, bound)
        return w, b

    k1, k2, k3 = jax.random.split(key, 3)
    w1, b1 = linear(k1, STATE_DIM, HIDDEN)
    w2, b2 = linear(k2, HIDDEN, HIDDEN)
    w3, b3 = linear(k3, HIDDEN, ACTION_DIM)
    return (w1, b1, w2, b2, w3, b3)


def reference_forward(x, params):
    w1, b1, w2, b2, w3, b3 = params
    h1 = jnp.maximum(x @ w1 + b1, 0.0)
    h2 = jnp.maximum(h1 @ w2 + b2, 0.0)
    return h2 @ w3 + b3


if __name__ == "__main__":
    key = jax.random.PRNGKey(0)
    kp, kx1, kx2 = jax.random.split(key, 3)
    params = init_params(kp)
    prepared = prepare_params(params)  # one-time padding + bf16 cast

    # Case 1: tiny, non-multiple-of-8 batch (exercises tail padding).
    x1 = jax.random.normal(kx1, (10, STATE_DIM), jnp.float32)
    out1 = jax.block_until_ready(qnetwork_forward(x1, prepared))
    ref1 = reference_forward(x1, params)
    assert out1.shape == (10, ACTION_DIM)
    # bf16 MXU operands (f32 accumulation) -> relaxed tolerance vs the f32 reference.
    assert jnp.allclose(out1, ref1, atol=5e-2, rtol=5e-2), "mismatch vs reference (B=10)"

    # Case 2: larger batch (single fat tile at block_b=1024; still exercises padding).
    x2 = jax.random.normal(kx2, (200, STATE_DIM), jnp.float32)
    out2 = jax.block_until_ready(qnetwork_forward(x2, prepared))
    ref2 = reference_forward(x2, params)
    assert out2.shape == (200, ACTION_DIM)
    assert jnp.allclose(out2, ref2, atol=5e-2, rtol=5e-2), "mismatch vs reference (B=200)"

    print("KERNEL_OK")
</pallas_src>

<mosaic_0001>
module attributes {stable_mosaic.version = 11 : i64} {
  func.func @qnet_kernel(%arg0: i32, %arg1: memref<16x4xf32, #tpu.memory_space<vmem>>, %arg2: memref<4x128xbf16, #tpu.memory_space<vmem>>, %arg3: memref<1x128xf32, #tpu.memory_space<vmem>>, %arg4: memref<128x128xbf16, #tpu.memory_space<vmem>>, %arg5: memref<1x128xf32, #tpu.memory_space<vmem>>, %arg6: memref<128x8xbf16, #tpu.memory_space<vmem>>, %arg7: memref<1x8xf32, #tpu.memory_space<vmem>>, %arg8: memref<16x8xf32, #tpu.memory_space<vmem>>) attributes {dimension_semantics = [#tpu.dimension_semantics<parallel>], iteration_bounds = array<i64: 1>, scalar_prefetch = 0 : i64, scratch_operands = 0 : i64, tpu.core_type = #tpu.core_type<tc>, window_params = [{transform_indices = @transform_0, window_bounds = array<i64: 16, 4>}, {pipeline_mode = #tpu.pipeline_mode<synchronous>, transform_indices = @transform_1, window_bounds = array<i64: 4, 128>}, {pipeline_mode = #tpu.pipeline_mode<synchronous>, transform_indices = @transform_2, window_bounds = array<i64: 1, 128>}, {pipeline_mode = #tpu.pipeline_mode<synchronous>, transform_indices = @transform_3, window_bounds = array<i64: 128, 128>}, {pipeline_mode = #tpu.pipeline_mode<synchronous>, transform_indices = @transform_4, window_bounds = array<i64: 1, 128>}, {pipeline_mode = #tpu.pipeline_mode<synchronous>, transform_indices = @transform_5, window_bounds = array<i64: 128, 8>}, {pipeline_mode = #tpu.pipeline_mode<synchronous>, transform_indices = @transform_6, window_bounds = array<i64: 1, 8>}, {transform_indices = @transform_7, window_bounds = array<i64: 16, 8>}]} {
    %c0 = arith.constant 0 : index
    %c0_0 = arith.constant 0 : index
    %0 = vector.load %arg1[%c0, %c0_0] : memref<16x4xf32, #tpu.memory_space<vmem>>, vector<16x4xf32>
    %1 = arith.truncf %0 : vector<16x4xf32> to vector<16x4xbf16>
    %c0_1 = arith.constant 0 : index
    %c0_2 = arith.constant 0 : index
    %2 = vector.load %arg2[%c0_1, %c0_2] : memref<4x128xbf16, #tpu.memory_space<vmem>>, vector<4x128xbf16>
    %cst = arith.constant dense<0.000000e+00> : vector<16x128xf32>
    %3 = tpu.matmul %1, %2, %cst {dimension_numbers = #tpu.dot_dimension_numbers<[1], [0], [0], [1], [0, 0, 1, 1], [], []>} : vector<16x4xbf16>, vector<4x128xbf16>, vector<16x128xf32> -> vector<16x128xf32>
    %c0_3 = arith.constant 0 : index
    %c0_4 = arith.constant 0 : index
    %4 = vector.load %arg3[%c0_3, %c0_4] : memref<1x128xf32, #tpu.memory_space<vmem>>, vector<1x128xf32>
    %5 = vector.broadcast %4 : vector<1x128xf32> to vector<16x128xf32>
    %6 = arith.addf %3, %5 : vector<16x128xf32>
    %cst_5 = arith.constant 0.000000e+00 : f32
    %7 = vector.broadcast %cst_5 : f32 to vector<16x128xf32>
    %8 = arith.maximumf %6, %7 : vector<16x128xf32>
    %9 = arith.truncf %8 : vector<16x128xf32> to vector<16x128xbf16>
    %c0_6 = arith.constant 0 : index
    %c0_7 = arith.constant 0 : index
    %10 = vector.load %arg4[%c0_6, %c0_7] : memref<128x128xbf16, #tpu.memory_space<vmem>>, vector<128x128xbf16>
    %cst_8 = arith.constant dense<0.000000e+00> : vector<16x128xf32>
    %11 = tpu.matmul %9, %10, %cst_8 {dimension_numbers = #tpu.dot_dimension_numbers<[1], [0], [0], [1], [0, 0, 1, 1], [], []>} : vector<16x128xbf16>, vector<128x128xbf16>, vector<16x128xf32> -> vector<16x128xf32>
    %c0_9 = arith.constant 0 : index
    %c0_10 = arith.constant 0 : index
    %12 = vector.load %arg5[%c0_9, %c0_10] : memref<1x128xf32, #tpu.memory_space<vmem>>, vector<1x128xf32>
    %13 = vector.broadcast %12 : vector<1x128xf32> to vector<16x128xf32>
    %14 = arith.addf %11, %13 : vector<16x128xf32>
    %cst_11 = arith.constant 0.000000e+00 : f32
    %15 = vector.broadcast %cst_11 : f32 to vector<16x128xf32>
    %16 = arith.maximumf %14, %15 : vector<16x128xf32>
    %17 = arith.truncf %16 : vector<16x128xf32> to vector<16x128xbf16>
    %c0_12 = arith.constant 0 : index
    %c0_13 = arith.constant 0 : index
    %18 = vector.load %arg6[%c0_12, %c0_13] : memref<128x8xbf16, #tpu.memory_space<vmem>>, vector<128x8xbf16>
    %cst_14 = arith.constant dense<0.000000e+00> : vector<16x8xf32>
    %19 = tpu.matmul %17, %18, %cst_14 {dimension_numbers = #tpu.dot_dimension_numbers<[1], [0], [0], [1], [0, 0, 1, 1], [], []>} : vector<16x128xbf16>, vector<128x8xbf16>, vector<16x8xf32> -> vector<16x8xf32>
    %c0_15 = arith.constant 0 : index
    %c0_16 = arith.constant 0 : index
    %20 = vector.load %arg7[%c0_15, %c0_16] : memref<1x8xf32, #tpu.memory_space<vmem>>, vector<1x8xf32>
    %21 = vector.broadcast %20 : vector<1x8xf32> to vector<16x8xf32>
    %22 = arith.addf %19, %21 : vector<16x8xf32>
    %c0_17 = arith.constant 0 : index
    %c0_18 = arith.constant 0 : index
    %23 = vector.load %arg8[%c0_17, %c0_18] : memref<16x8xf32, #tpu.memory_space<vmem>>, vector<16x8xf32>
    tpu.vector_store %arg8[%c0_17, %c0_18], %22 {strides = array<i32>} : memref<16x8xf32, #tpu.memory_space<vmem>>, vector<16x8xf32>,
    return
  }
  func.func @transform_0(%arg0: i32) -> (i32, i32) {
    %c0_i32 = arith.constant 0 : i32
    %c0_i32_0 = arith.constant 0 : i32
    return %arg0, %c0_i32 : i32, i32
  }
  func.func @transform_1(%arg0: i32) -> (i32, i32) {
    %c0_i32 = arith.constant 0 : i32
    %c0_i32_0 = arith.constant 0 : i32
    %c0_i32_1 = arith.constant 0 : i32
    return %c0_i32, %c0_i32_0 : i32, i32
  }
  func.func @transform_2(%arg0: i32) -> (i32, i32) {
    %c0_i32 = arith.constant 0 : i32
    %c0_i32_0 = arith.constant 0 : i32
    %c0_i32_1 = arith.constant 0 : i32
    return %c0_i32, %c0_i32_0 : i32, i32
  }
  func.func @transform_3(%arg0: i32) -> (i32, i32) {
    %c0_i32 = arith.constant 0 : i32
    %c0_i32_0 = arith.constant 0 : i32
    %c0_i32_1 = arith.constant 0 : i32
    return %c0_i32, %c0_i32_0 : i32, i32
  }
  func.func @transform_4(%arg0: i32) -> (i32, i32) {
    %c0_i32 = arith.constant 0 : i32
    %c0_i32_0 = arith.constant 0 : i32
    %c0_i32_1 = arith.constant 0 : i32
    return %c0_i32, %c0_i32_0 : i32, i32
  }
  func.func @transform_5(%arg0: i32) -> (i32, i32) {
    %c0_i32 = arith.constant 0 : i32
    %c0_i32_0 = arith.constant 0 : i32
    %c0_i32_1 = arith.constant 0 : i32
    return %c0_i32, %c0_i32_0 : i32, i32
  }
  func.func @transform_6(%arg0: i32) -> (i32, i32) {
    %c0_i32 = arith.constant 0 : i32
    %c0_i32_0 = arith.constant 0 : i32
    %c0_i32_1 = arith.constant 0 : i32
    return %c0_i32, %c0_i32_0 : i32, i32
  }
  func.func @transform_7(%arg0: i32) -> (i32, i32) {
    %c0_i32 = arith.constant 0 : i32
    %c0_i32_0 = arith.constant 0 : i32
    return %arg0, %c0_i32 : i32, i32
  }
}

</mosaic_0001>

<llo_original>
// kernel: qnetwork_forward.1
$region0: #{qnetwork_forward.1}
  #allocation0 [shape = 'u32[]', space=smem, size = 0x4, offset = 0x4, fixed_abs, tag = 'smem constant byte address 0x4 - core index']
  #allocation1 [shape = 'u32[144,128]{1,0:T(1,128)}', space=vmem, size = 0x12000, scoped, tag = 'internal scratch']
  %s0 = inlined_call_operand.vmem [shape: f32[16,4], index: 0, kind: input, shape index: {}]
  %s1 = inlined_call_operand.vmem [shape: bf16[4,128], index: 1, kind: input, shape index: {}]
  %s2 = inlined_call_operand.vmem [shape: f32[1,128], index: 2, kind: input, shape index: {}]
  %s3 = inlined_call_operand.vmem [shape: bf16[128,128], index: 3, kind: input, shape index: {}]
  %s4 = inlined_call_operand.vmem [shape: f32[1,128], index: 4, kind: input, shape index: {}]
  %s5 = inlined_call_operand.vmem [shape: bf16[128,8], index: 5, kind: input, shape index: {}]
  %s6 = inlined_call_operand.vmem [shape: f32[1,8], index: 6, kind: input, shape index: {}]
  %s7 = inlined_call_operand.vmem [shape: f32[16,8], index: 7, kind: output, shape index: {}]
  %s8 = sld [smem:[#allocation0]]
  $region38: #{qnetwork_forward.1} parent=0
    _
  %s10 = ssub.s32 1, %s8
  %s11 = scalar_select 0, %s10, %s8
  // Predicated region
  $region2: #{qnetwork_forward.1} parent=0 // pred_check
    _
  $region3: #{qnetwork_forward.1} parent=0 // pred_check_branch
    %13 = sbr.rel (0) target = $region5
  $region4: #{qnetwork_forward.1} parent=0 // pred_region
    _
  $region5: #{qnetwork_forward.1} parent=0 // pred_fallthru
    _
  // Predicated region
  $region6: #{qnetwork_forward.1} parent=0 // pred_check
    _
  $region7: #{qnetwork_forward.1} parent=0 // pred_check_branch
    %15 = sbr.rel (0) target = $region9
  $region8: #{qnetwork_forward.1} parent=0 // pred_region
    _
  $region9: #{qnetwork_forward.1} parent=0 // pred_fallthru
    _
  // Predicated region
  $region10: #{qnetwork_forward.1} parent=0 // pred_check
    _
  $region11: #{qnetwork_forward.1} parent=0 // pred_check_branch
    %17 = sbr.rel (0) target = $region13
  $region12: #{qnetwork_forward.1} parent=0 // pred_region
    _
  $region13: #{qnetwork_forward.1} parent=0 // pred_fallthru
    _
  // Predicated region
  $region14: #{qnetwork_forward.1} parent=0 // pred_check
    _
  $region15: #{qnetwork_forward.1} parent=0 // pred_check_branch
    %19 = sbr.rel (0) target = $region17
  $region16: #{qnetwork_forward.1} parent=0 // pred_region
    _
  $region17: #{qnetwork_forward.1} parent=0 // pred_fallthru
    _
  // Predicated region
  $region18: #{qnetwork_forward.1} parent=0 // pred_check
    _
  $region19: #{qnetwork_forward.1} parent=0 // pred_check_branch
    %21 = sbr.rel (0) target = $region21
  $region20: #{qnetwork_forward.1} parent=0 // pred_region
    _
  $region21: #{qnetwork_forward.1} parent=0 // pred_fallthru
    _
  // Predicated region
  $region22: #{qnetwork_forward.1} parent=0 // pred_check
    _
  $region23: #{qnetwork_forward.1} parent=0 // pred_check_branch
    %23 = sbr.rel (0) target = $region25
  $region24: #{qnetwork_forward.1} parent=0 // pred_region
    _
  $region25: #{qnetwork_forward.1} parent=0 // pred_fallthru
    _
  // Predicated region
  $region26: #{qnetwork_forward.1} parent=0 // pred_check
    _
  $region27: #{qnetwork_forward.1} parent=0 // pred_check_branch
    %25 = sbr.rel (0) target = $region29
  $region28: #{qnetwork_forward.1} parent=0 // pred_region
    _
  $region29: #{qnetwork_forward.1} parent=0 // pred_fallthru
    _
  %v27 = vld [vmem:[%s0] sm:$0xff]
  %v28 = vld [vmem:[%s0 + $0x8] sm:$0xff]
  %v29 = vpack.c.bf16 %v28, %v27
  %v30 = vld [vmem:[%s1] sm:$0x3]
  %v31 = vld [vmem:[%s2] sm:$0x1]
  %v33 = vlaneseq
  %v34 = vshrl.u32 %v33, 7
  %v35 = vsub.s32 0, %v34
  %v36 = vrot.slane %v31, %v35
  %vm38 = vcmask 31744
  %v40 = vsel %vm38, %v29, 0
  %vm42 = vcmask 1041408
  %v44 = vsel %vm42, %v30, 0
  %46 = vmatprep.subr.bf16.mxu0 0
  %47 = vmatpush1.bf16.msra.mxu0 %v44
  %48 = vmatprep.subr.bf16.mxu0 0
  %49 = vmatpush1.bf16.msra.mxu0 0
  %50 = vmatprep.subr.bf16.mxu0 0
  %51 = vmatpush1.bf16.msra.mxu0 0
  %52 = vmatprep.subr.bf16.mxu0 0
  %53 = vmatpush1.bf16.msra.mxu0 0
  %54 = vmatprep.subr.bf16.mxu0 0
  %55 = vmatpush1.bf16.msra.mxu0 0
  %56 = vmatprep.subr.bf16.mxu0 0
  %57 = vmatpush1.bf16.msra.mxu0 0
  %58 = vmatprep.subr.bf16.mxu0 0
  %59 = vmatpush1.bf16.msra.mxu0 0
  %60 = vmatprep.subr.bf16.mxu0 0
  %61 = vmatpush1.bf16.msra.mxu0 0
  %62 = vmatprep.subr.bf16.mxu0 0
  %63 = vmatpush1.bf16.msra.mxu0 0
  %64 = vmatprep.subr.bf16.mxu0 0
  %65 = vmatpush1.bf16.msra.mxu0 0
  %66 = vmatprep.subr.bf16.mxu0 0
  %67 = vmatpush1.bf16.msra.mxu0 0
  %68 = vmatprep.subr.bf16.mxu0 0
  %69 = vmatpush1.bf16.msra.mxu0 0
  %70 = vmatprep.subr.bf16.mxu0 0
  %71 = vmatpush1.bf16.msra.mxu0 0
  %72 = vmatprep.subr.bf16.mxu0 0
  %73 = vmatpush1.bf16.msra.mxu0 0
  %74 = vmatprep.subr.bf16.mxu0 0
  %75 = vmatpush1.bf16.msra.mxu0 0
  %76 = vmatprep.subr.bf16.mxu0 0
  %77 = vmatpush1.bf16.msra.mxu0 0
  %78 = vmatprep.mubr.bf16.mxu0 0
  %79 = vmatmul.mubr.bf16.gmra.mrb[0].mxu0 %v40
  %v80 = vpop.f32.mrb[0].mxu0
  %v81 = vadd.f32 %v36, %v80
  %v82 = vpop.f32.mrb[0].mxu0
  %v83 = vpop.f32.mrb[0].mxu0
  %v84 = vadd.f32 %v36, %v83
  %v85 = vpop.f32.mrb[0].mxu0
  %86 = vdwg.mxu0
  %v87 = vmax.f32 %v81, 0.0
  %v88 = vmax.f32 %v84, 0.0
  %v89 = vpack.c.bf16 %v88, %v87
  %v90 = vld [vmem:[%s3] sm:$0xf]
  %v91 = vld [vmem:[%s3 + $0x4] sm:$0xf]
  %v92 = vld [vmem:[%s3 + $0x8] sm:$0xf]
  %v93 = vld [vmem:[%s3 + $0xc] sm:$0xf]
  %v94 = vld [vmem:[%s3 + $0x10] sm:$0xf]
  %v95 = vld [vmem:[%s3 + $0x14] sm:$0xf]
  %v96 = vld [vmem:[%s3 + $0x18] sm:$0xf]
  %v97 = vld [vmem:[%s3 + $0x1c] sm:$0xf]
  %v98 = vld [vmem:[%s3 + $0x20] sm:$0xf]
  %v99 = vld [vmem:[%s3 + $0x24] sm:$0xf]
  %v100 = vld [vmem:[%s3 + $0x28] sm:$0xf]
  %v101 = vld [vmem:[%s3 + $0x2c] sm:$0xf]
  %v102 = vld [vmem:[%s3 + $0x30] sm:$0xf]
  %v103 = vld [vmem:[%s3 + $0x34] sm:$0xf]
  %v104 = vld [vmem:[%s3 + $0x38] sm:$0xf]
  %v105 = vld [vmem:[%s3 + $0x3c] sm:$0xf]
  %v106 = vld [vmem:[%s4] sm:$0x1]
  %v108 = vlaneseq
  %v109 = vshrl.u32 %v108, 7
  %v110 = vsub.s32 0, %v109
  %v111 = vrot.slane %v106, %v110
  %v129 = vunpack.c.l.b16 %v90
  %v130 = vunpack.c.l.b16 %v91
  %v131 = vunpack.c.l.b16 %v92
  %v132 = vunpack.c.l.b16 %v93
  %v133 = vunpack.c.l.b16 %v94
  %v134 = vunpack.c.l.b16 %v95
  %v135 = vunpack.c.l.b16 %v96
  %v136 = vunpack.c.l.b16 %v97
  %v137 = vunpack.c.l.b16 %v98
  %v138 = vunpack.c.l.b16 %v99
  %v139 = vunpack.c.l.b16 %v100
  %v140 = vunpack.c.l.b16 %v101
  %v141 = vunpack.c.l.b16 %v102
  %v142 = vunpack.c.l.b16 %v103
  %v143 = vunpack.c.l.b16 %v104
  %v144 = vunpack.c.l.b16 %v105
  %v145 = vpack.c.b16 %v130, %v129
  %v146 = vpack.c.b16 %v132, %v131
  %v147 = vpack.c.b16 %v134, %v133
  %v148 = vpack.c.b16 %v136, %v135
  %v149 = vpack.c.b16 %v138, %v137
  %v150 = vpack.c.b16 %v140, %v139
  %v151 = vpack.c.b16 %v142, %v141
  %v152 = vpack.c.b16 %v144, %v143
  %161 = vmatprep.subr.bf16.mxu0 0
  %162 = vmatpush1.bf16.msra.mxu0 %v145
  %163 = vmatprep.subr.bf16.mxu0 0
  %164 = vmatpush1.bf16.msra.mxu0 %v146
  %165 = vmatprep.subr.bf16.mxu0 0
  %166 = vmatpush1.bf16.msra.mxu0 %v147
  %167 = vmatprep.subr.bf16.mxu0 0
  %168 = vmatpush1.bf16.msra.mxu0 %v148
  %169 = vmatprep.subr.bf16.mxu0 0
  %170 = vmatpush1.bf16.msra.mxu0 %v149
  %171 = vmatprep.subr.bf16.mxu0 0
  %172 = vmatpush1.bf16.msra.mxu0 %v150
  %173 = vmatprep.subr.bf16.mxu0 0
  %174 = vmatpush1.bf16.msra.mxu0 %v151
  %175 = vmatprep.subr.bf16.mxu0 0
  %176 = vmatpush1.bf16.msra.mxu0 %v152
  %177 = vmatprep.subr.bf16.mxu0 0
  %178 = vmatpush1.bf16.msra.mxu0 0
  %179 = vmatprep.subr.bf16.mxu0 0
  %180 = vmatpush1.bf16.msra.mxu0 0
  %181 = vmatprep.subr.bf16.mxu0 0
  %182 = vmatpush1.bf16.msra.mxu0 0
  %183 = vmatprep.subr.bf16.mxu0 0
  %184 = vmatpush1.bf16.msra.mxu0 0
  %185 = vmatprep.subr.bf16.mxu0 0
  %186 = vmatpush1.bf16.msra.mxu0 0
  %187 = vmatprep.subr.bf16.mxu0 0
  %188 = vmatpush1.bf16.msra.mxu0 0
  %189 = vmatprep.subr.bf16.mxu0 0
  %190 = vmatpush1.bf16.msra.mxu0 0
  %191 = vmatprep.subr.bf16.mxu0 0
  %192 = vmatpush1.bf16.msra.mxu0 0
  %193 = vmatprep.mubr.bf16.mxu0 0
  %194 = vmatmul.mubr.bf16.gmra.mrb[0].mxu0 %v89
  %v195 = vpop.f32.mrb[0].mxu0
  %v196 = vadd.f32 %v111, %v195
  %v197 = vpop.f32.mrb[0].mxu0
  %v198 = vpop.f32.mrb[0].mxu0
  %v199 = vadd.f32 %v111, %v198
  %v200 = vpop.f32.mrb[0].mxu0
  %201 = vdwg.mxu0
  %v202 = vmax.f32 %v196, 0.0
  %v203 = vmax.f32 %v199, 0.0
  %v204 = vpack.c.bf16 %v203, %v202
  %v205 = vld [vmem:[%s5] sm:$0xf]
  %v206 = vld [vmem:[%s5 + $0x4] sm:$0xf]
  %v207 = vld [vmem:[%s5 + $0x8] sm:$0xf]
  %v208 = vld [vmem:[%s5 + $0xc] sm:$0xf]
  %v209 = vld [vmem:[%s5 + $0x10] sm:$0xf]
  %v210 = vld [vmem:[%s5 + $0x14] sm:$0xf]
  %v211 = vld [vmem:[%s5 + $0x18] sm:$0xf]
  %v212 = vld [vmem:[%s5 + $0x1c] sm:$0xf]
  %v213 = vld [vmem:[%s5 + $0x20] sm:$0xf]
  %v214 = vld [vmem:[%s5 + $0x24] sm:$0xf]
  %v215 = vld [vmem:[%s5 + $0x28] sm:$0xf]
  %v216 = vld [vmem:[%s5 + $0x2c] sm:$0xf]
  %v217 = vld [vmem:[%s5 + $0x30] sm:$0xf]
  %v218 = vld [vmem:[%s5 + $0x34] sm:$0xf]
  %v219 = vld [vmem:[%s5 + $0x38] sm:$0xf]
  %v220 = vld [vmem:[%s5 + $0x3c] sm:$0xf]
  %v221 = vld [vmem:[%s6] sm:$0x1]
  %v223 = vlaneseq
  %v224 = vshrl.u32 %v223, 7
  %v225 = vsub.s32 0, %v224
  %v226 = vrot.slane %v221, %v225
  %v244 = vunpack.c.l.b16 %v205
  %v245 = vunpack.c.l.b16 %v206
  %v246 = vunpack.c.l.b16 %v207
  %v247 = vunpack.c.l.b16 %v208
  %v248 = vunpack.c.l.b16 %v209
  %v249 = vunpack.c.l.b16 %v210
  %v250 = vunpack.c.l.b16 %v211
  %v251 = vunpack.c.l.b16 %v212
  %v252 = vunpack.c.l.b16 %v213
  %v253 = vunpack.c.l.b16 %v214
  %v254 = vunpack.c.l.b16 %v215
  %v255 = vunpack.c.l.b16 %v216
  %v256 = vunpack.c.l.b16 %v217
  %v257 = vunpack.c.l.b16 %v218
  %v258 = vunpack.c.l.b16 %v219
  %v259 = vunpack.c.l.b16 %v220
  %v260 = vpack.c.b16 %v245, %v244
  %v261 = vpack.c.b16 %v247, %v246
  %v262 = vpack.c.b16 %v249, %v248
  %v263 = vpack.c.b16 %v251, %v250
  %v264 = vpack.c.b16 %v253, %v252
  %v265 = vpack.c.b16 %v255, %v254
  %v266 = vpack.c.b16 %v257, %v256
  %v267 = vpack.c.b16 %v259, %v258
  %276 = vmatprep.subr.bf16.mxu0 0
  %277 = vmatpush1.bf16.msra.mxu0 %v260
  %278 = vmatprep.subr.bf16.mxu0 0
  %279 = vmatpush1.bf16.msra.mxu0 %v261
  %280 = vmatprep.subr.bf16.mxu0 0
  %281 = vmatpush1.bf16.msra.mxu0 %v262
  %282 = vmatprep.subr.bf16.mxu0 0
  %283 = vmatpush1.bf16.msra.mxu0 %v263
  %284 = vmatprep.subr.bf16.mxu0 0
  %285 = vmatpush1.bf16.msra.mxu0 %v264
  %286 = vmatprep.subr.bf16.mxu0 0
  %287 = vmatpush1.bf16.msra.mxu0 %v265
  %288 = vmatprep.subr.bf16.mxu0 0
  %289 = vmatpush1.bf16.msra.mxu0 %v266
  %290 = vmatprep.subr.bf16.mxu0 0
  %291 = vmatpush1.bf16.msra.mxu0 %v267
  %292 = vmatprep.subr.bf16.mxu0 0
  %293 = vmatpush1.bf16.msra.mxu0 0
  %294 = vmatprep.subr.bf16.mxu0 0
  %295 = vmatpush1.bf16.msra.mxu0 0
  %296 = vmatprep.subr.bf16.mxu0 0
  %297 = vmatpush1.bf16.msra.mxu0 0
  %298 = vmatprep.subr.bf16.mxu0 0
  %299 = vmatpush1.bf16.msra.mxu0 0
  %300 = vmatprep.subr.bf16.mxu0 0
  %301 = vmatpush1.bf16.msra.mxu0 0
  %302 = vmatprep.subr.bf16.mxu0 0
  %303 = vmatpush1.bf16.msra.mxu0 0
  %304 = vmatprep.subr.bf16.mxu0 0
  %305 = vmatpush1.bf16.msra.mxu0 0
  %306 = vmatprep.subr.bf16.mxu0 0
  %307 = vmatpush1.bf16.msra.mxu0 0
  %308 = vmatprep.mubr.bf16.mxu0 0
  %309 = vmatmul.mubr.bf16.gmra.mrb[0].mxu0 %v204
  %v310 = vpop.f32.mrb[0].mxu0
  %v311 = vadd.f32 %v226, %v310
  %v312 = vpop.f32.mrb[0].mxu0
  %v313 = vpop.f32.mrb[0].mxu0
  %v314 = vadd.f32 %v226, %v313
  %v315 = vpop.f32.mrb[0].mxu0
  %316 = vdwg.mxu0
  %vm317 = vcmask 64512
  %318 = vst.msk [vmem:[%s7] sm:$0xff] %vm317, %v311
  %319 = vst.msk [vmem:[%s7 + $0x8] sm:$0xff] %vm317, %v314
  // Predicated region
  $region30: #{qnetwork_forward.1} parent=0 // pred_check
    _
  $region31: #{qnetwork_forward.1} parent=0 // pred_check_branch
    %321 = sbr.rel (0) target = $region33
  $region32: #{qnetwork_forward.1} parent=0 // pred_region
    _
  $region33: #{qnetwork_forward.1} parent=0 // pred_fallthru
    _
  // Predicated region
  $region34: #{qnetwork_forward.1} parent=0 // pred_check
    _
  $region35: #{qnetwork_forward.1} parent=0 // pred_check_branch
    %323 = sbr.rel (0) target = $region37
  $region36: #{qnetwork_forward.1} parent=0 // pred_region
    _
  $region37: #{qnetwork_forward.1} parent=0 // pred_fallthru
    _

</llo_original>
